<compile_context>
chip_gen: v6e
topology: v6e:2x2x1
jax: 0.10.0
libtpu: 0.0.40
codegen_flags: <defaults>
</compile_context>

<pallas_src>
import jax
import jax.numpy as jnp
from jax import lax
from jax.experimental import pallas as pl
from jax.experimental.pallas import tpu as pltpu

EPS = 1e-8
LANES = 128
SUBLANES = 8
# 4096 x 128 f32 = 2 MiB per input per buffer; 3 inputs x 2 buffers = 12 MiB.
MAX_TILE_ROWS = 4096


def _round_up(x, m):
    return ((x + m - 1) // m) * m


def _row_align(dtypes):
    """Row granularity for the narrowest streamed dtype (sublane packing)."""
    item = min(jnp.dtype(d).itemsize for d in dtypes)
    return SUBLANES * max(1, 4 // max(item, 1))   # f32->8, bf16->16, int8->32


def _make_kernel(*, has_weight, eps, approx_recip, tile_r, tiles_per_core,
                 tiles_total, rows, needs_mask):
    has_partial = (rows % tile_r) != 0
    # tiles with index < full_limit are completely valid (no mask needed);
    # tile (tiles_total - 1) is the (optional) partial tile; anything beyond
    # tiles_total is pure grid overhang and is skipped entirely.
    full_limit = tiles_total - 1 if has_partial else tiles_total
    valid_rows_last = rows - (tiles_total - 1) * tile_r        # static int

    def kernel(*refs):
        if has_weight:
            p_ref, t_ref, w_ref, num_ref, den_ref = refs
        else:
            p_ref, t_ref, num_ref = refs
            w_ref = den_ref = None

        c = pl.program_id(0)   # TensorCore split ("parallel")
        j = pl.program_id(1)   # serial reduction over tiles ("arbitrary")

        @pl.when(j == 0)
        def _():
            num_ref[...] = jnp.zeros_like(num_ref)
            if has_weight:
                den_ref[...] = jnp.zeros_like(den_ref)

        def accumulate(mask_rows):
            p = p_ref[...].astype(jnp.float32)
            t = t_ref[...].astype(jnp.float32)
            den = jnp.abs(p) + jnp.abs(t) + eps
            num = 2.0 * jnp.abs(t - p)
            if approx_recip:
                sape = num * pl.reciprocal(den, approx=True)
            else:
                sape = num / den

            if has_weight:
                w = w_ref[...].astype(jnp.float32)
                num_c = sape * w
                den_c = w
            else:
                num_c = sape
                den_c = None

            if mask_rows is not None:
                # Static mask for the single partial tile.  Keep the SELECT
                # form: out-of-bounds rows of the edge block hold unspecified
                # VMEM data and must not be multiplied into the accumulator.
                valid = (lax.broadcasted_iota(jnp.int32, (tile_r, LANES), 0)
                         < mask_rows)
                num_c = jnp.where(valid, num_c, 0.0)
                if has_weight:
                    den_c = jnp.where(valid, den_c, 0.0)

            # vreg-shaped accumulation: (tile_r,128)->(tile_r/8,8,128), sum
            # over axis 0 is pure VALU vreg adds (no per-step XLU reduce).
            num_ref[...] += jnp.sum(
                num_c.reshape(tile_r // SUBLANES, SUBLANES, LANES), axis=0)
            if has_weight:
                den_ref[...] += jnp.sum(
                    den_c.reshape(tile_r // SUBLANES, SUBLANES, LANES), axis=0)

        if not needs_mask:
            accumulate(None)                      # steady state: mask-free
        else:
            tile_idx = c * tiles_per_core + j

            @pl.when(tile_idx < full_limit)       # full tiles: mask-free
            def _():
                accumulate(None)

            if has_partial:
                @pl.when(tile_idx == tiles_total - 1)
                def _():
                    accumulate(valid_rows_last)   # only tile that pays the mask
            # tile_idx >= tiles_total: overhanging step, accumulation skipped.

    return kernel


def smape(pred, target, weight=None, eps=EPS, *,
          max_tile_rows=MAX_TILE_ROWS, approx_recip=False):
    """Pallas TPU implementation of SMAPE.forward. Returns a float32 scalar."""
    assert pred.shape == target.shape
    has_weight = weight is not None
    if has_weight:
        assert weight.shape == pred.shape
    n = int(pred.size)
    assert n > 0

    arrays = [pred.reshape(-1), target.reshape(-1)]
    if has_weight:
        arrays.append(weight.reshape(-1))

    row_align = _row_align([a.dtype for a in arrays])

    if n % LANES == 0 and (n // LANES) >= row_align:
        # Free reshape: no HBM copy.  Ragged last tile handled by in-kernel mask.
        rows = n // LANES
    else:
        # Fallback for truly ragged n: minimal zero-pad (this copies the
        # inputs once).  Padded zeros contribute exactly 0 to both sums.
        # TODO(synk): a tiny plain-JAX tail epilogue would avoid this copy too.
        total = _round_up(n, row_align * LANES)
        pad = total - n
        arrays = [jnp.pad(a, (0, pad)) for a in arrays]
        rows = total // LANES

    arrays = [a.reshape(rows, LANES) for a in arrays]

    # Largest dtype-aligned tile not exceeding the row count / the VMEM budget.
    tile_r = min(_round_up(max_tile_rows, row_align),
                 (rows // row_align) * row_align)
    tiles_total = pl.cdiv(rows, tile_r)
    nc = 2 if tiles_total >= 2 else 1             # v7x: one half per TC
    tiles_per_core = pl.cdiv(tiles_total, nc)
    needs_mask = (nc * tiles_per_core * tile_r) != rows

    def in_map(c, j):
        # Clamp so overhanging grid steps just re-read the last valid tile;
        # their accumulation is skipped inside the kernel.
        return (jnp.minimum(c * tiles_per_core + j, tiles_total - 1), 0)

    def out_map(c, j):
        return (c, 0)

    in_spec = pl.BlockSpec((tile_r, LANES), in_map)
    out_spec = pl.BlockSpec((SUBLANES, LANES), out_map)
    acc_shape = jax.ShapeDtypeStruct((nc * SUBLANES, LANES), jnp.float32)

    n_in = 3 if has_weight else 2
    n_out = 2 if has_weight else 1

    kernel = _make_kernel(has_weight=has_weight, eps=eps,
                          approx_recip=approx_recip, tile_r=tile_r,
                          tiles_per_core=tiles_per_core,
                          tiles_total=tiles_total, rows=rows,
                          needs_mask=needs_mask)

    outs = pl.pallas_call(
        kernel,
        out_shape=tuple([acc_shape] * n_out),
        grid_spec=pltpu.PrefetchScalarGridSpec(
            num_scalar_prefetch=0,
            grid=(nc, tiles_per_core),
            in_specs=[in_spec] * n_in,
            out_specs=tuple([out_spec] * n_out),
        ),
        compiler_params=pltpu.CompilerParams(
            dimension_semantics=("parallel", "arbitrary")),
    )(*arrays)

    if has_weight:
        num_acc, den_acc = outs
        return jnp.sum(num_acc) / jnp.sum(den_acc)
    return 100.0 * jnp.sum(outs[0]) / n


def _ref_smape(pred, target, weight=None, eps=EPS):
    """Pure-JAX reference mirroring the PyTorch SMAPE module."""
    sape = 2.0 * jnp.abs(target - pred) / (jnp.abs(pred) + jnp.abs(target) + eps)
    if weight is None:
        return 100.0 * jnp.mean(sape)
    return jnp.sum(sape * weight / jnp.sum(weight))


if __name__ == "__main__":
    key = jax.random.PRNGKey(0)
    k1, k2, k3 = jax.random.split(key, 3)

    shape = (2, 4, 16, 16)
    pred = jax.random.normal(k1, shape, dtype=jnp.float32)
    target = jax.random.normal(k2, shape, dtype=jnp.float32)
    weight = jax.random.uniform(k3, shape, dtype=jnp.float32) + 0.1

    # unweighted / weighted, single-tile fast path (no pad, no mask)
    out_unw = jax.block_until_ready(smape(pred, target))
    ref_unw = _ref_smape(pred, target)
    assert jnp.allclose(out_unw, ref_unw, rtol=1e-5, atol=1e-5), (out_unw, ref_unw)
    out_w = jax.block_until_ready(smape(pred, target, weight))
    ref_w = _ref_smape(pred, target, weight)
    assert jnp.allclose(out_w, ref_w, rtol=1e-5, atol=1e-5), (out_w, ref_w)

    # two-TensorCore split (rows=16, tile_r=8, grid=(2,1))
    out_mc = jax.block_until_ready(smape(pred, target, max_tile_rows=8))
    assert jnp.allclose(out_mc, ref_unw, rtol=1e-5, atol=1e-5)

    # partial last tile + overhanging grid step (rows=1040, tile_r=512,
    # tiles_total=3, grid=(2,2): tile 2 masked to 16 rows, tile 3 skipped)
    shape2 = (2, 4, 130, 128)
    p2 = jax.random.normal(k1, shape2, dtype=jnp.float32)
    t2 = jax.random.normal(k2, shape2, dtype=jnp.float32)
    w2 = jax.random.uniform(k3, shape2, dtype=jnp.float32) + 0.1
    assert jnp.allclose(jax.block_until_ready(smape(p2, t2, max_tile_rows=512)),
                        _ref_smape(p2, t2), rtol=1e-5, atol=1e-5)
    assert jnp.allclose(jax.block_until_ready(smape(p2, t2, w2, max_tile_rows=512)),
                        _ref_smape(p2, t2, w2), rtol=1e-5, atol=1e-5)
    # default tile: single 1040-row block, no pad copy, no mask
    assert jnp.allclose(jax.block_until_ready(smape(p2, t2, w2)),
                        _ref_smape(p2, t2, w2), rtol=1e-5, atol=1e-5)

    # ragged n -> zero-pad fallback path
    shape3 = (3, 5, 7)
    p3 = jax.random.normal(k1, shape3, dtype=jnp.float32)
    t3 = jax.random.normal(k2, shape3, dtype=jnp.float32)
    w3 = jax.random.uniform(k3, shape3, dtype=jnp.float32) + 0.1
    assert jnp.allclose(jax.block_until_ready(smape(p3, t3)),
                        _ref_smape(p3, t3), rtol=1e-5, atol=1e-5)
    assert jnp.allclose(jax.block_until_ready(smape(p3, t3, w3)),
                        _ref_smape(p3, t3, w3), rtol=1e-5, atol=1e-5)

    # bf16 streaming (dtype-aware 16-row alignment), cast to f32 in-kernel
    pb = pred.astype(jnp.bfloat16)
    tb = target.astype(jnp.bfloat16)
    out_bf = jax.block_until_ready(smape(pb, tb))
    ref_bf = _ref_smape(pb.astype(jnp.float32), tb.astype(jnp.float32))
    assert jnp.allclose(out_bf, ref_bf, rtol=1e-4, atol=1e-4), (out_bf, ref_bf)

    print("KERNEL_OK")
</pallas_src>

<mosaic_0001>
module attributes {stable_mosaic.version = 11 : i64} {
  func.func @kernel(%arg0: i32, %arg1: i32, %arg2: memref<16x128xf32, #tpu.memory_space<vmem>>, %arg3: memref<16x128xf32, #tpu.memory_space<vmem>>, %arg4: memref<8x128xf32, #tpu.memory_space<vmem>>) attributes {dimension_semantics = [#tpu.dimension_semantics<parallel>, #tpu.dimension_semantics<arbitrary>], iteration_bounds = array<i64: 1, 1>, scalar_prefetch = 0 : i64, scratch_operands = 0 : i64, tpu.core_type = #tpu.core_type<tc>, window_params = [{transform_indices = @transform_0, window_bounds = array<i64: 16, 128>}, {transform_indices = @transform_1, window_bounds = array<i64: 16, 128>}, {transform_indices = @transform_2, window_bounds = array<i64: 8, 128>}]} {
    %c0_i32 = arith.constant 0 : i32
    %0 = arith.cmpi eq, %arg1, %c0_i32 : i32
    %1 = arith.extui %0 : i1 to i32
    %c0_i32_0 = arith.constant 0 : i32
    %2 = arith.cmpi ne, %1, %c0_i32_0 : i32
    scf.if %2 {
      %cst_10 = arith.constant 0.000000e+00 : f32
      %20 = vector.broadcast %cst_10 : f32 to vector<8x128xf32>
      %c0_11 = arith.constant 0 : index
      %c0_12 = arith.constant 0 : index
      %21 = vector.load %arg4[%c0_11, %c0_12] : memref<8x128xf32, #tpu.memory_space<vmem>>, vector<8x128xf32>
      tpu.vector_store %arg4[%c0_11, %c0_12], %20 {strides = array<i32>} : memref<8x128xf32, #tpu.memory_space<vmem>>, vector<8x128xf32>,
    } else {
    }
    %c0 = arith.constant 0 : index
    %c0_1 = arith.constant 0 : index
    %3 = vector.load %arg2[%c0, %c0_1] : memref<16x128xf32, #tpu.memory_space<vmem>>, vector<16x128xf32>
    %c0_2 = arith.constant 0 : index
    %c0_3 = arith.constant 0 : index
    %4 = vector.load %arg3[%c0_2, %c0_3] : memref<16x128xf32, #tpu.memory_space<vmem>>, vector<16x128xf32>
    %5 = math.absf %3 : vector<16x128xf32>
    %6 = math.absf %4 : vector<16x128xf32>
    %7 = arith.addf %5, %6 : vector<16x128xf32>
    %cst = arith.constant 9.99999993E-9 : f32
    %8 = vector.broadcast %cst : f32 to vector<16x128xf32>
    %9 = arith.addf %7, %8 : vector<16x128xf32>
    %10 = arith.subf %4, %3 : vector<16x128xf32>
    %11 = math.absf %10 : vector<16x128xf32>
    %cst_4 = arith.constant 2.000000e+00 : f32
    %12 = vector.broadcast %cst_4 : f32 to vector<16x128xf32>
    %13 = arith.mulf %12, %11 : vector<16x128xf32>
    %14 = arith.divf %13, %9 : vector<16x128xf32>
    %c0_5 = arith.constant 0 : index
    %c0_6 = arith.constant 0 : index
    %15 = vector.load %arg4[%c0_5, %c0_6] : memref<8x128xf32, #tpu.memory_space<vmem>>, vector<8x128xf32>
    %16 = vector.shape_cast %14 : vector<16x128xf32> to vector<2x8x128xf32>
    %cst_7 = arith.constant dense<0.000000e+00> : vector<8x128xf32>
    %17 = vector.multi_reduction <add>, %16, %cst_7 [0] : vector<2x8x128xf32> to vector<8x128xf32>
    %18 = arith.addf %15, %17 : vector<8x128xf32>
    %c0_8 = arith.constant 0 : index
    %c0_9 = arith.constant 0 : index
    %19 = vector.load %arg4[%c0_8, %c0_9] : memref<8x128xf32, #tpu.memory_space<vmem>>, vector<8x128xf32>
    tpu.vector_store %arg4[%c0_8, %c0_9], %18 {strides = array<i32>} : memref<8x128xf32, #tpu.memory_space<vmem>>, vector<8x128xf32>,
    return
  }
  func.func @transform_0(%arg0: i32, %arg1: i32) -> (i32, i32) {
    %c1_i32 = arith.constant 1 : i32
    %0 = arith.muli %arg0, %c1_i32 : i32
    %1 = arith.addi %0, %arg1 : i32
    %c0_i32 = arith.constant 0 : i32
    %2 = arith.minsi %1, %c0_i32 : i32
    %c0_i32_0 = arith.constant 0 : i32
    %c0_i32_1 = arith.constant 0 : i32
    return %2, %c0_i32_0 : i32, i32
  }
  func.func @transform_1(%arg0: i32, %arg1: i32) -> (i32, i32) {
    %c1_i32 = arith.constant 1 : i32
    %0 = arith.muli %arg0, %c1_i32 : i32
    %1 = arith.addi %0, %arg1 : i32
    %c0_i32 = arith.constant 0 : i32
    %2 = arith.minsi %1, %c0_i32 : i32
    %c0_i32_0 = arith.constant 0 : i32
    %c0_i32_1 = arith.constant 0 : i32
    return %2, %c0_i32_0 : i32, i32
  }
  func.func @transform_2(%arg0: i32, %arg1: i32) -> (i32, i32) {
    %c0_i32 = arith.constant 0 : i32
    %c0_i32_0 = arith.constant 0 : i32
    return %arg0, %c0_i32 : i32, i32
  }
}

</mosaic_0001>

<llo_original>
// kernel: tpu_custom_call.1
$region0: #{tpu_custom_call.1}
  #allocation0 [shape = 'u32[]', space=smem, size = 0x4, offset = 0x4, fixed_abs, tag = 'smem constant byte address 0x4 - core index']
  #allocation1 [shape = 'u32[144,128]{1,0:T(1,128)}', space=vmem, size = 0x12000, scoped, tag = 'internal scratch']
  %s0 = inlined_call_operand.hbm [shape: f32[16,128], index: 0, kind: input, shape index: {}]
  %s1 = inlined_call_operand.hbm [shape: f32[16,128], index: 1, kind: input, shape index: {}]
  %s2 = inlined_call_operand.hbm [shape: f32[8,128], index: 2, kind: output, shape index: {}]
  %s3 = sld [smem:[#allocation0]]
  $region30: #{tpu_custom_call.1} parent=0
    _
  %s5 = ssub.s32 1, %s3
  %s6 = scalar_select 0, %s5, %s3
  $region1: #{tpu_custom_call.1} parent=0
    #allocation2 [shape = 'u8[8192]{0}', space=vmem, size = 0x2000, scoped, tag = 'input window, operand 0, single buffered']
    #allocation3 [shape = 's32[1]{0}', space=sflag, size = 0x4, scoped, tag = 'scoped memory for tpu_custom_call.1']
    #allocation4 [shape = 's32[1]{0}', space=sflag, size = 0x4, scoped, tag = 'scoped memory for tpu_custom_call.1']
    #allocation5 [shape = 'u8[8192]{0}', space=vmem, size = 0x2000, scoped, tag = 'input window, operand 1, single buffered']
    #allocation6 [shape = 's32[1]{0}', space=sflag, size = 0x4, scoped, tag = 'scoped memory for tpu_custom_call.1']
    #allocation7 [shape = 'u8[4096]{0}', space=vmem, size = 0x1000, scoped, tag = 'output window, operand 0, single buffered']
    %7 = vsyncpa [#allocation3], 0
    %8 = vsyncpa [#allocation6], 0
    %9 = vsyncpa [#allocation4], 0
    // Predicated region
    $region2: #{tpu_custom_call.1} parent=1 // pred_check
      _
    $region3: #{tpu_custom_call.1} parent=1 // pred_check_branch
      %11 = sbr.rel (0) target = $region5
    $region4: #{tpu_custom_call.1} parent=1 // pred_region
      %s12 = sadd.s32 0, 0
      %p13 = scmp.lt.s32.totalorder %s12, 0
      %s14 = scalar_select %p13, %s12, 0
      %s15 = smul.u32 2, %s14
      %s17 = ssub.s32 256, 256
      %18 = vsyncadd [#allocation3], %s17
      %s19 = smul.addr %s15, 128
      %s20 = scalar_lea.hbm %s0, %s19
      %s21 = sshll.u32 [#allocation2], 4
      %s22 = int_to_ptr.vmem [resolvable:$true] %s21
      %27 = dma.hbm_to_vmem [thread:$0]  %s20, 256, %s22, [#allocation3], 128, 128, 8
    $region5: #{tpu_custom_call.1} parent=1 // pred_fallthru
      _
    // Predicated region
    $region6: #{tpu_custom_call.1} parent=1 // pred_check
      _
    $region7: #{tpu_custom_call.1} parent=1 // pred_check_branch
      %29 = sbr.rel (0) target = $region9
    $region8: #{tpu_custom_call.1} parent=1 // pred_region
      %s30 = sadd.s32 0, 0
      %p31 = scmp.lt.s32.totalorder %s30, 0
      %s32 = scalar_select %p31, %s30, 0
      %s33 = smul.u32 2, %s32
      %s35 = ssub.s32 256, 256
      %36 = vsyncadd [#allocation6], %s35
      %s37 = smul.addr %s33, 128
      %s38 = scalar_lea.hbm %s1, %s37
      %s39 = sshll.u32 [#allocation5], 4
      %s40 = int_to_ptr.vmem [resolvable:$true] %s39
      %45 = dma.hbm_to_vmem [thread:$0]  %s38, 256, %s40, [#allocation6], 128, 128, 8
    $region9: #{tpu_custom_call.1} parent=1 // pred_fallthru
      _
    // Predicated region
    $region10: #{tpu_custom_call.1} parent=1 // pred_check
      _
    $region11: #{tpu_custom_call.1} parent=1 // pred_check_branch
      %47 = sbr.rel (0) target = $region13
    $region12: #{tpu_custom_call.1} parent=1 // pred_region
      %48 = dma.done [#allocation3], 256
    $region13: #{tpu_custom_call.1} parent=1 // pred_fallthru
      _
    // Predicated region
    $region14: #{tpu_custom_call.1} parent=1 // pred_check
      _
    $region15: #{tpu_custom_call.1} parent=1 // pred_check_branch
      %50 = sbr.rel (0) target = $region17
    $region16: #{tpu_custom_call.1} parent=1 // pred_region
      %51 = dma.done [#allocation6], 256
    $region17: #{tpu_custom_call.1} parent=1 // pred_fallthru
      _
    %s52 = sadd.s32 0, 0
    %p53 = scmp.lt.s32.totalorder %s52, 0
    %s54 = scalar_select %p53, %s52, 0
    %s55 = smul.u32 2, %s54
    %s56 = sadd.s32 0, 0
    %p57 = scmp.lt.s32.totalorder %s56, 0
    %s58 = scalar_select %p57, %s56, 0
    %s59 = smul.u32 2, %s58
    %p60 = scmp.eq.s32.totalorder 0, 0
    // Predicated region
    $region18: #{tpu_custom_call.1} parent=1 // pred_check
      %p61 = pneg %p60
    $region19: #{tpu_custom_call.1} parent=1 // pred_check_branch
      %63 = sbr.rel (%p61) target = $region21
    $region20: #{tpu_custom_call.1} parent=1 // pred_region
      %64 = vst [vmem:[#allocation7] sm:$0xff] 0.0
    $region21: #{tpu_custom_call.1} parent=1 // pred_fallthru
      _
    %v65 = vld [vmem:[#allocation2] sm:$0xff]
    %v66 = vld [vmem:[#allocation2 + $0x8] sm:$0xff]
    %v67 = vld [vmem:[#allocation5] sm:$0xff]
    %v68 = vld [vmem:[#allocation5 + $0x8] sm:$0xff]
    %v69 = vand.u32 2147483647, %v65
    %v70 = vand.u32 2147483647, %v66
    %v71 = vand.u32 2147483647, %v67
    %v72 = vand.u32 2147483647, %v68
    %v73 = vadd.f32 %v69, %v71
    %v74 = vadd.f32 %v70, %v72
    %v75 = vadd.f32 %v73, 1e-08
    %v76 = vadd.f32 %v74, 1e-08
    %v77 = vsub.f32 %v67, %v65
    %v78 = vsub.f32 %v68, %v66
    %v79 = vand.u32 2147483647, %v77
    %v80 = vand.u32 2147483647, %v78
    %v81 = vmul.f32 %v79, 2.0
    %v82 = vmul.f32 %v80, 2.0
    %v83 = vrcp.pop %v75
    %v84 = vmul.f32 %v81, %v83
    %v85 = vrcp.pop %v76
    %v86 = vmul.f32 %v82, %v85
    %v87 = vld [vmem:[#allocation7] sm:$0xff]
    %v88 = vadd.f32 %v84, %v86
    %v89 = vadd.f32 %v87, %v88
    %90 = vst [vmem:[#allocation7] sm:$0xff] %v89
    // Predicated region
    $region22: #{tpu_custom_call.1} parent=1 // pred_check
      _
    $region23: #{tpu_custom_call.1} parent=1 // pred_check_branch
      %92 = sbr.rel (0) target = $region25
    $region24: #{tpu_custom_call.1} parent=1 // pred_region
      %s94 = ssub.s32 128, 128
      %95 = vsyncadd [#allocation4], %s94
      %s97 = sshll.u32 [#allocation7], 4
      %s98 = int_to_ptr.vmem [resolvable:$true] %s97
      %100 = dma.vmem_to_hbm [thread:$0]  %s98, 128, %s2, [#allocation4]
    $region25: #{tpu_custom_call.1} parent=1 // pred_fallthru
      _
    // Predicated region
    $region26: #{tpu_custom_call.1} parent=1 // pred_check
      _
    $region27: #{tpu_custom_call.1} parent=1 // pred_check_branch
      %102 = sbr.rel (0) target = $region29
    $region28: #{tpu_custom_call.1} parent=1 // pred_region
      %103 = dma.done [#allocation4], 128
    $region29: #{tpu_custom_call.1} parent=1 // pred_fallthru
      _
    %104 = vsyncpa [#allocation3], 1
    %105 = vsyncpa [#allocation6], 1
    %106 = vsyncpa [#allocation4], 1

</llo_original>
